<compile_context>
chip_gen: v7x
topology: tpu7x:2x2x1
jax: 0.10.0
libtpu: 0.0.40
codegen_flags: <defaults>
</compile_context>

<pallas_src>
import jax
import jax.numpy as jnp
from jax.experimental import pallas as pl
from jax.experimental.pallas import tpu as pltpu
from jax.scipy.linalg import block_diag


def _fused_critic_kernel(xs_ref, xa_ref, w1s_ref, w1a_ref, b1_ref,
                         w2_ref, b2_ref, w3_ref, b3_ref, o_ref):
    # xs:  (TR, A*S)    xa:  (TR, A*Na)            -- streamed, f32 in HBM
    # w1s: (A*S, A*H)   w1a: (A*Na, A*H)  b1: (1, A*H)
    # w2:  (A*H, A*H)   b2:  (1, A*H)
    # w3:  (A*H, A)     b3:  (1, A)                -- w3/biases kept f32
    # o:   (TR, A)
    cdt = w1s_ref.dtype  # MXU input dtype (f32 or bf16); cast happens in-kernel
    xs = xs_ref[...].astype(cdt)
    xa = xa_ref[...].astype(cdt)
    h1 = (jnp.dot(xs, w1s_ref[...], preferred_element_type=jnp.float32)
          + jnp.dot(xa, w1a_ref[...], preferred_element_type=jnp.float32)
          + b1_ref[...])
    h1 = jnp.maximum(h1, 0.0).astype(w2_ref.dtype)
    h2 = jnp.dot(h1, w2_ref[...], preferred_element_type=jnp.float32) + b2_ref[...]
    # Final head stays f32 (tiny weight, no bandwidth cost, keeps Q precision).
    h2 = jnp.maximum(h2, 0.0).astype(w3_ref.dtype)
    q = jnp.dot(h2, w3_ref[...], preferred_element_type=jnp.float32) + b3_ref[...]
    o_ref[...] = q.astype(o_ref.dtype)


def pack_params(params, state_dim, compute_dtype=jnp.float32):
    """Pack per-agent MLP params into fused block-diagonal weights.

    Call ONCE at parameter-load time (a few KiB of data), not per forward.
    compute_dtype controls the MXU input dtype for w1/w2 (and the in-kernel
    activation cast); w3 and all biases stay f32.
    """
    w1, b1 = params["w1"], params["b1"]   # (A, D, H), (A, 1, H)
    w2, b2 = params["w2"], params["b2"]   # (A, H, H), (A, 1, H)
    w3, b3 = params["w3"], params["b3"]   # (A, H, 1), (A, 1, 1)
    A, _, H = w1.shape
    w1s = w1[:, :state_dim, :]            # (A, S,  H) — multiplies the state part
    w1a = w1[:, state_dim:, :]            # (A, Na, H) — multiplies the action part
    return {
        "w1s": block_diag(*[w1s[a] for a in range(A)]).astype(compute_dtype),
        "w1a": block_diag(*[w1a[a] for a in range(A)]).astype(compute_dtype),
        "w2": block_diag(*[w2[a] for a in range(A)]).astype(compute_dtype),
        # Head weight kept f32 (critic-value precision; KiB-sized).
        "w3": block_diag(*[w3[a] for a in range(A)]).astype(jnp.float32),
        # Biases stay f32 (added onto the f32 MXU accumulations).
        "b1": b1.reshape(1, A * H).astype(jnp.float32),
        "b2": b2.reshape(1, A * H).astype(jnp.float32),
        "b3": b3.reshape(1, A).astype(jnp.float32),
        "n_agents": A,
        "hidden_dim": H,
    }


def _round_up(x, m):
    return ((x + m - 1) // m) * m


def _choose_row_tile(R, max_tile, gran):
    """Pick a row tile: big (amortize per-step cost), multiple of `gran`
    (8 for f32, 16 for bf16), and guaranteeing >= 2 grid steps when enough
    rows exist so v7x's two TensorCores both get work."""
    max_tile = max(gran, _round_up(max_tile, gran))
    tr = min(max_tile, _round_up(R, gran))
    if R > 2 * gran and pl.cdiv(R, tr) < 2:
        tr = max(gran, _round_up(pl.cdiv(R, 2), gran))
    return tr


def maddpg_critic_ns_forward(inputs, actions, packed, *, row_tile=2048):
    """Pallas forward for MADDPGCriticNS (non-image case).

    inputs:  (bs, T, n_agents, state_dim)           float32
    actions: (bs, T, n_agents, n_actions*n_agents)  float32
    packed:  output of pack_params (block-diagonal fused weights)
    returns: (bs, T, n_agents, 1) float32
    """
    bs, T, A, S = inputs.shape
    Na = actions.shape[-1]
    AH = packed["w2"].shape[0]            # A * H
    R = bs * T

    # bf16 packs 16 rows per sublane group; f32 packs 8.
    gran = 16 if packed["w1s"].dtype == jnp.bfloat16 else 8
    tr = _choose_row_tile(R, row_tile, gran)
    n_tiles = pl.cdiv(R, tr)              # ragged last block handled by Pallas

    # Contiguous reshapes only — no concat, no transpose, no pad, no cast.
    xs = inputs.reshape(R, A * S)
    xa = actions.reshape(R, A * Na)

    grid_spec = pl.GridSpec(
        grid=(n_tiles,),
        in_specs=[
            # Streamed activations (tiled over rows; last tile may be ragged).
            pl.BlockSpec((tr, A * S), lambda r: (r, 0)),
            pl.BlockSpec((tr, A * Na), lambda r: (r, 0)),
            # Fused weights/biases: constant index_map -> resident in VMEM,
            # no re-DMA across grid steps (few tens of KiB total).
            pl.BlockSpec((A * S, AH), lambda r: (0, 0)),
            pl.BlockSpec((A * Na, AH), lambda r: (0, 0)),
            pl.BlockSpec((1, AH), lambda r: (0, 0)),
            pl.BlockSpec((AH, AH), lambda r: (0, 0)),
            pl.BlockSpec((1, AH), lambda r: (0, 0)),
            pl.BlockSpec((AH, A), lambda r: (0, 0)),
            pl.BlockSpec((1, A), lambda r: (0, 0)),
        ],
        # Lane-sparse (tr, A) output is intentional: masked stores are cheap,
        # padding to 128 lanes would ~42x the HBM write traffic.
        out_specs=pl.BlockSpec((tr, A), lambda r: (r, 0)),
    )

    out = pl.pallas_call(
        _fused_critic_kernel,
        out_shape=jax.ShapeDtypeStruct((R, A), jnp.float32),
        grid_spec=grid_spec,
        compiler_params=pltpu.CompilerParams(
            dimension_semantics=("parallel",),
            # Explicit scoped-VMEM budget so big row tiles keep full
            # pipelining depth (usage ~10-12 MiB at tr=2048 f32; v7x has
            # 64 MiB physical, v5e/v6e have 128 MiB).
            vmem_limit_bytes=48 * 1024 * 1024,
        ),
    )(xs, xa, packed["w1s"], packed["w1a"], packed["b1"],
      packed["w2"], packed["b2"], packed["w3"], packed["b3"])

    # (R, A) -> (bs, T, A, 1): pure reshape, no transpose, no slicing.
    return out.reshape(bs, T, A, 1)


def _reference_forward(inputs, actions, params):
    """Pure-JAX reference (per-agent loop, mirrors the PyTorch module)."""
    bs, T, n_agents, _ = inputs.shape
    qs = []
    for i in range(n_agents):
        xi = jnp.concatenate([inputs[:, :, i], actions[:, :, i]], axis=-1)
        h1 = jnp.maximum(xi @ params["w1"][i] + params["b1"][i][0], 0.0)
        h2 = jnp.maximum(h1 @ params["w2"][i] + params["b2"][i][0], 0.0)
        q = h2 @ params["w3"][i] + params["b3"][i][0]
        qs.append(q[:, :, None, :])
    return jnp.concatenate(qs, axis=2)


def init_params(key, n_agents, input_dim, hidden_dim):
    """Per-agent MLP params: Linear(D,H), Linear(H,H), Linear(H,1)."""
    ks = jax.random.split(key, 6)
    scale1 = 1.0 / jnp.sqrt(jnp.float32(input_dim))
    scale2 = 1.0 / jnp.sqrt(jnp.float32(hidden_dim))
    return {
        "w1": jax.random.uniform(ks[0], (n_agents, input_dim, hidden_dim),
                                 jnp.float32, -scale1, scale1),
        "b1": jax.random.uniform(ks[1], (n_agents, 1, hidden_dim),
                                 jnp.float32, -scale1, scale1),
        "w2": jax.random.uniform(ks[2], (n_agents, hidden_dim, hidden_dim),
                                 jnp.float32, -scale2, scale2),
        "b2": jax.random.uniform(ks[3], (n_agents, 1, hidden_dim),
                                 jnp.float32, -scale2, scale2),
        "w3": jax.random.uniform(ks[4], (n_agents, hidden_dim, 1),
                                 jnp.float32, -scale2, scale2),
        "b3": jax.random.uniform(ks[5], (n_agents, 1, 1),
                                 jnp.float32, -scale2, scale2),
    }


if __name__ == "__main__":
    # Shapes consistent with the module's forward:
    #   scheme['state']['vshape'] = 12, n_actions = 4, n_agents = 3
    #   -> input_shape D = 12 + 4*3 = 24; hidden_dim = 32
    n_agents = 3
    state_dim = 12
    n_actions = 4
    hidden_dim = 32
    D = state_dim + n_actions * n_agents

    key = jax.random.PRNGKey(0)
    k_in, k_act, k_par = jax.random.split(key, 3)
    params = init_params(k_par, n_agents, D, hidden_dim)

    # Pack once at "parameter-load time" (hoisted out of the forward).
    packed_f32 = pack_params(params, state_dim, compute_dtype=jnp.float32)
    packed_bf16 = pack_params(params, state_dim, compute_dtype=jnp.bfloat16)

    # --- Case 1: small rectangular batch (bs=2, T=8), single tile. ---------
    bs, T = 2, 8
    inputs = jax.random.normal(k_in, (bs, T, n_agents, state_dim), jnp.float32)
    actions = jax.random.uniform(k_act, (bs, T, n_agents, n_actions * n_agents),
                                 jnp.float32)
    q_ref = _reference_forward(inputs, actions, params)

    q = jax.block_until_ready(maddpg_critic_ns_forward(inputs, actions, packed_f32))
    assert q.shape == (bs, T, n_agents, 1), q.shape
    assert jnp.allclose(q, q_ref, rtol=1e-4, atol=1e-4), "f32 mismatch vs reference"

    # bf16 MXU-input path (in-kernel activation cast; w3/biases stay f32).
    q_bf16 = jax.block_until_ready(
        maddpg_critic_ns_forward(inputs, actions, packed_bf16))
    assert q_bf16.shape == (bs, T, n_agents, 1), q_bf16.shape
    assert jnp.allclose(q_bf16, q_ref, rtol=5e-2, atol=5e-2), "bf16 mismatch vs reference"

    # --- Case 2: R=25 -> exercises the 2-tile split (v7x dual-TC path) and
    #             the ragged last block (padded reads / masked writes). ------
    bs2, T2 = 5, 5
    k_in2, k_act2 = jax.random.split(jax.random.PRNGKey(1), 2)
    inputs2 = jax.random.normal(k_in2, (bs2, T2, n_agents, state_dim), jnp.float32)
    actions2 = jax.random.uniform(k_act2, (bs2, T2, n_agents, n_actions * n_agents),
                                  jnp.float32)
    q2_ref = _reference_forward(inputs2, actions2, params)
    q2 = jax.block_until_ready(
        maddpg_critic_ns_forward(inputs2, actions2, packed_f32))
    assert q2.shape == (bs2, T2, n_agents, 1), q2.shape
    assert jnp.allclose(q2, q2_ref, rtol=1e-4, atol=1e-4), "ragged-grid mismatch vs reference"

    print("KERNEL_OK")
</pallas_src>

<mosaic_0001>
module attributes {stable_mosaic.version = 11 : i64} {
  func.func @_fused_critic_kernel(%arg0: i32, %arg1: memref<16x36xf32, #tpu.memory_space<vmem>>, %arg2: memref<16x36xf32, #tpu.memory_space<vmem>>, %arg3: memref<36x96xf32, #tpu.memory_space<vmem>>, %arg4: memref<36x96xf32, #tpu.memory_space<vmem>>, %arg5: memref<1x96xf32, #tpu.memory_space<vmem>>, %arg6: memref<96x96xf32, #tpu.memory_space<vmem>>, %arg7: memref<1x96xf32, #tpu.memory_space<vmem>>, %arg8: memref<96x3xf32, #tpu.memory_space<vmem>>, %arg9: memref<1x3xf32, #tpu.memory_space<vmem>>, %arg10: memref<16x3xf32, #tpu.memory_space<vmem>>) attributes {dimension_semantics = [#tpu.dimension_semantics<parallel>], iteration_bounds = array<i64: 1>, scalar_prefetch = 0 : i64, scratch_operands = 0 : i64, tpu.core_type = #tpu.core_type<tc>, window_params = [{transform_indices = @transform_0, window_bounds = array<i64: 16, 36>}, {transform_indices = @transform_1, window_bounds = array<i64: 16, 36>}, {pipeline_mode = #tpu.pipeline_mode<synchronous>, transform_indices = @transform_2, window_bounds = array<i64: 36, 96>}, {pipeline_mode = #tpu.pipeline_mode<synchronous>, transform_indices = @transform_3, window_bounds = array<i64: 36, 96>}, {pipeline_mode = #tpu.pipeline_mode<synchronous>, transform_indices = @transform_4, window_bounds = array<i64: 1, 96>}, {pipeline_mode = #tpu.pipeline_mode<synchronous>, transform_indices = @transform_5, window_bounds = array<i64: 96, 96>}, {pipeline_mode = #tpu.pipeline_mode<synchronous>, transform_indices = @transform_6, window_bounds = array<i64: 1, 96>}, {pipeline_mode = #tpu.pipeline_mode<synchronous>, transform_indices = @transform_7, window_bounds = array<i64: 96, 3>}, {pipeline_mode = #tpu.pipeline_mode<synchronous>, transform_indices = @transform_8, window_bounds = array<i64: 1, 3>}, {transform_indices = @transform_9, window_bounds = array<i64: 16, 3>}]} {
    %c0 = arith.constant 0 : index
    %c0_0 = arith.constant 0 : index
    %0 = vector.load %arg1[%c0, %c0_0] : memref<16x36xf32, #tpu.memory_space<vmem>>, vector<16x36xf32>
    %c0_1 = arith.constant 0 : index
    %c0_2 = arith.constant 0 : index
    %1 = vector.load %arg2[%c0_1, %c0_2] : memref<16x36xf32, #tpu.memory_space<vmem>>, vector<16x36xf32>
    %c0_3 = arith.constant 0 : index
    %c0_4 = arith.constant 0 : index
    %2 = vector.load %arg3[%c0_3, %c0_4] : memref<36x96xf32, #tpu.memory_space<vmem>>, vector<36x96xf32>
    %cst = arith.constant dense<0.000000e+00> : vector<16x96xf32>
    %3 = tpu.matmul %0, %2, %cst {dimension_numbers = #tpu.dot_dimension_numbers<[1], [0], [0], [1], [0, 0, 1, 1], [], []>} : vector<16x36xf32>, vector<36x96xf32>, vector<16x96xf32> -> vector<16x96xf32>
    %c0_5 = arith.constant 0 : index
    %c0_6 = arith.constant 0 : index
    %4 = vector.load %arg4[%c0_5, %c0_6] : memref<36x96xf32, #tpu.memory_space<vmem>>, vector<36x96xf32>
    %cst_7 = arith.constant dense<0.000000e+00> : vector<16x96xf32>
    %5 = tpu.matmul %1, %4, %cst_7 {dimension_numbers = #tpu.dot_dimension_numbers<[1], [0], [0], [1], [0, 0, 1, 1], [], []>} : vector<16x36xf32>, vector<36x96xf32>, vector<16x96xf32> -> vector<16x96xf32>
    %6 = arith.addf %3, %5 : vector<16x96xf32>
    %c0_8 = arith.constant 0 : index
    %c0_9 = arith.constant 0 : index
    %7 = vector.load %arg5[%c0_8, %c0_9] : memref<1x96xf32, #tpu.memory_space<vmem>>, vector<1x96xf32>
    %8 = vector.broadcast %7 : vector<1x96xf32> to vector<16x96xf32>
    %9 = arith.addf %6, %8 : vector<16x96xf32>
    %cst_10 = arith.constant 0.000000e+00 : f32
    %10 = vector.broadcast %cst_10 : f32 to vector<16x96xf32>
    %11 = arith.maximumf %9, %10 : vector<16x96xf32>
    %c0_11 = arith.constant 0 : index
    %c0_12 = arith.constant 0 : index
    %12 = vector.load %arg6[%c0_11, %c0_12] : memref<96x96xf32, #tpu.memory_space<vmem>>, vector<96x96xf32>
    %cst_13 = arith.constant dense<0.000000e+00> : vector<16x96xf32>
    %13 = tpu.matmul %11, %12, %cst_13 {dimension_numbers = #tpu.dot_dimension_numbers<[1], [0], [0], [1], [0, 0, 1, 1], [], []>} : vector<16x96xf32>, vector<96x96xf32>, vector<16x96xf32> -> vector<16x96xf32>
    %c0_14 = arith.constant 0 : index
    %c0_15 = arith.constant 0 : index
    %14 = vector.load %arg7[%c0_14, %c0_15] : memref<1x96xf32, #tpu.memory_space<vmem>>, vector<1x96xf32>
    %15 = vector.broadcast %14 : vector<1x96xf32> to vector<16x96xf32>
    %16 = arith.addf %13, %15 : vector<16x96xf32>
    %cst_16 = arith.constant 0.000000e+00 : f32
    %17 = vector.broadcast %cst_16 : f32 to vector<16x96xf32>
    %18 = arith.maximumf %16, %17 : vector<16x96xf32>
    %c0_17 = arith.constant 0 : index
    %c0_18 = arith.constant 0 : index
    %19 = vector.load %arg8[%c0_17, %c0_18] : memref<96x3xf32, #tpu.memory_space<vmem>>, vector<96x3xf32>
    %cst_19 = arith.constant dense<0.000000e+00> : vector<16x3xf32>
    %20 = tpu.matmul %18, %19, %cst_19 {dimension_numbers = #tpu.dot_dimension_numbers<[1], [0], [0], [1], [0, 0, 1, 1], [], []>} : vector<16x96xf32>, vector<96x3xf32>, vector<16x3xf32> -> vector<16x3xf32>
    %c0_20 = arith.constant 0 : index
    %c0_21 = arith.constant 0 : index
    %21 = vector.load %arg9[%c0_20, %c0_21] : memref<1x3xf32, #tpu.memory_space<vmem>>, vector<1x3xf32>
    %22 = vector.broadcast %21 : vector<1x3xf32> to vector<16x3xf32>
    %23 = arith.addf %20, %22 : vector<16x3xf32>
    %c0_22 = arith.constant 0 : index
    %c0_23 = arith.constant 0 : index
    %24 = vector.load %arg10[%c0_22, %c0_23] : memref<16x3xf32, #tpu.memory_space<vmem>>, vector<16x3xf32>
    tpu.vector_store %arg10[%c0_22, %c0_23], %23 {strides = array<i32>} : memref<16x3xf32, #tpu.memory_space<vmem>>, vector<16x3xf32>,
    return
  }
  func.func @transform_0(%arg0: i32) -> (i32, i32) {
    %c0_i32 = arith.constant 0 : i32
    %c0_i32_0 = arith.constant 0 : i32
    return %arg0, %c0_i32 : i32, i32
  }
  func.func @transform_1(%arg0: i32) -> (i32, i32) {
    %c0_i32 = arith.constant 0 : i32
    %c0_i32_0 = arith.constant 0 : i32
    return %arg0, %c0_i32 : i32, i32
  }
  func.func @transform_2(%arg0: i32) -> (i32, i32) {
    %c0_i32 = arith.constant 0 : i32
    %c0_i32_0 = arith.constant 0 : i32
    %c0_i32_1 = arith.constant 0 : i32
    return %c0_i32, %c0_i32_0 : i32, i32
  }
  func.func @transform_3(%arg0: i32) -> (i32, i32) {
    %c0_i32 = arith.constant 0 : i32
    %c0_i32_0 = arith.constant 0 : i32
    %c0_i32_1 = arith.constant 0 : i32
    return %c0_i32, %c0_i32_0 : i32, i32
  }
  func.func @transform_4(%arg0: i32) -> (i32, i32) {
    %c0_i32 = arith.constant 0 : i32
    %c0_i32_0 = arith.constant 0 : i32
    %c0_i32_1 = arith.constant 0 : i32
    return %c0_i32, %c0_i32_0 : i32, i32
  }
  func.func @transform_5(%arg0: i32) -> (i32, i32) {
    %c0_i32 = arith.constant 0 : i32
    %c0_i32_0 = arith.constant 0 : i32
    %c0_i32_1 = arith.constant 0 : i32
    return %c0_i32, %c0_i32_0 : i32, i32
  }
  func.func @transform_6(%arg0: i32) -> (i32, i32) {
    %c0_i32 = arith.constant 0 : i32
    %c0_i32_0 = arith.constant 0 : i32
    %c0_i32_1 = arith.constant 0 : i32
    return %c0_i32, %c0_i32_0 : i32, i32
  }
  func.func @transform_7(%arg0: i32) -> (i32, i32) {
    %c0_i32 = arith.constant 0 : i32
    %c0_i32_0 = arith.constant 0 : i32
    %c0_i32_1 = arith.constant 0 : i32
    return %c0_i32, %c0_i32_0 : i32, i32
  }
  func.func @transform_8(%arg0: i32) -> (i32, i32) {
    %c0_i32 = arith.constant 0 : i32
    %c0_i32_0 = arith.constant 0 : i32
    %c0_i32_1 = arith.constant 0 : i32
    return %c0_i32, %c0_i32_0 : i32, i32
  }
  func.func @transform_9(%arg0: i32) -> (i32, i32) {
    %c0_i32 = arith.constant 0 : i32
    %c0_i32_0 = arith.constant 0 : i32
    return %arg0, %c0_i32 : i32, i32
  }
}

</mosaic_0001>

<llo_original>
// kernel: tpu_custom_call.1
$region0: #{tpu_custom_call.1}
  #allocation0 [shape = 'u32[]', space=smem, size = 0x4, offset = 0x4, fixed_abs, tag = 'smem constant byte address 0x4 - core index']
  #allocation1 [shape = 'u32[144,128]{1,0:T(1,128)}', space=vmem, size = 0x12000, scoped, tag = 'internal scratch']
  %s0 = inlined_call_operand.vmem [shape: f32[16,36], index: 0, kind: input, shape index: {}]
  %s1 = inlined_call_operand.hbm [shape: f32[16,36], index: 1, kind: input, shape index: {}]
  %s2 = inlined_call_operand.hbm [shape: f32[36,96], index: 2, kind: input, shape index: {}]
  %s3 = inlined_call_operand.hbm [shape: f32[36,96], index: 3, kind: input, shape index: {}]
  %s4 = inlined_call_operand.vmem [shape: f32[1,96], index: 4, kind: input, shape index: {}]
  %s5 = inlined_call_operand.vmem [shape: f32[96,96], index: 5, kind: input, shape index: {}]
  %s6 = inlined_call_operand.vmem [shape: f32[1,96], index: 6, kind: input, shape index: {}]
  %s7 = inlined_call_operand.vmem [shape: f32[96,3], index: 7, kind: input, shape index: {}]
  %s8 = inlined_call_operand.vmem [shape: f32[1,3], index: 8, kind: input, shape index: {}]
  %s9 = inlined_call_operand.vmem [shape: f32[16,3], index: 9, kind: output, shape index: {}]
  %s10 = sld [smem:[#allocation0]]
  $region58: #{tpu_custom_call.1} parent=0
    _
  %s12 = ssub.s32 1, %s10
  %s13 = scalar_select 0, %s12, %s10
  $region1: #{tpu_custom_call.1} parent=0
    #allocation2 [shape = 'u8[8192]{0}', space=vmem, size = 0x2000, scoped, tag = 'input window, operand 1, single buffered']
    #allocation3 [shape = 's32[1]{0}', space=sflag, size = 0x4, scoped, tag = 'scoped memory for tpu_custom_call.1']
    #allocation4 [shape = 'u8[20480]{0}', space=vmem, size = 0x5000, scoped, tag = 'input window, operand 2, single buffered']
    #allocation5 [shape = 's32[1]{0}', space=sflag, size = 0x4, scoped, tag = 'scoped memory for tpu_custom_call.1']
    #allocation6 [shape = 'u8[20480]{0}', space=vmem, size = 0x5000, scoped, tag = 'input window, operand 3, single buffered']
    %14 = vsyncpa [#allocation3], 0
    %15 = vsyncpa [#allocation5], 0
    // Predicated region
    $region2: #{tpu_custom_call.1} parent=1 // pred_check
      _
    $region3: #{tpu_custom_call.1} parent=1 // pred_check_branch
      %17 = sbr.rel (0) target = $region5
    $region4: #{tpu_custom_call.1} parent=1 // pred_region
      _
    $region5: #{tpu_custom_call.1} parent=1 // pred_fallthru
      _
    // Predicated region
    $region6: #{tpu_custom_call.1} parent=1 // pred_check
      _
    $region7: #{tpu_custom_call.1} parent=1 // pred_check_branch
      %19 = sbr.rel (0) target = $region9
    $region8: #{tpu_custom_call.1} parent=1 // pred_region
      %s21 = ssub.s32 256, 256
      %22 = vsyncadd [#allocation3], %s21
      %s23 = sshll.u32 [#allocation2], 4
      %s24 = int_to_ptr.vmem [resolvable:$true] %s23
      %29 = dma.hbm_to_vmem [thread:$0]  %s1, 256, %s24, [#allocation3], 128, 128, 8
    $region9: #{tpu_custom_call.1} parent=1 // pred_fallthru
      _
    // Predicated region
    $region10: #{tpu_custom_call.1} parent=1 // pred_check
      _
    $region11: #{tpu_custom_call.1} parent=1 // pred_check_branch
      %31 = sbr.rel (0) target = $region13
    $region12: #{tpu_custom_call.1} parent=1 // pred_region
      %s33 = ssub.s32 640, 640
      %34 = vsyncadd [#allocation5], %s33
      %s35 = sshll.u32 [#allocation4], 4
      %s36 = int_to_ptr.vmem [resolvable:$true] %s35
      %41 = dma.hbm_to_vmem [thread:$0]  %s2, 640, %s36, [#allocation5], 128, 128, 8
    $region13: #{tpu_custom_call.1} parent=1 // pred_fallthru
      _
    // Predicated region
    $region14: #{tpu_custom_call.1} parent=1 // pred_check
      _
    $region15: #{tpu_custom_call.1} parent=1 // pred_check_branch
      %43 = sbr.rel (0) target = $region17
    $region16: #{tpu_custom_call.1} parent=1 // pred_region
      %s45 = ssub.s32 640, 640
      %46 = vsyncadd [#allocation5], %s45
      %s47 = sshll.u32 [#allocation6], 4
      %s48 = int_to_ptr.vmem [resolvable:$true] %s47
      %53 = dma.hbm_to_vmem [thread:$0]  %s3, 640, %s48, [#allocation5], 128, 128, 8
    $region17: #{tpu_custom_call.1} parent=1 // pred_fallthru
      _
    // Predicated region
    $region18: #{tpu_custom_call.1} parent=1 // pred_check
      _
    $region19: #{tpu_custom_call.1} parent=1 // pred_check_branch
      %55 = sbr.rel (0) target = $region21
    $region20: #{tpu_custom_call.1} parent=1 // pred_region
      _
    $region21: #{tpu_custom_call.1} parent=1 // pred_fallthru
      _
    // Predicated region
    $region22: #{tpu_custom_call.1} parent=1 // pred_check
      _
    $region23: #{tpu_custom_call.1} parent=1 // pred_check_branch
      %57 = sbr.rel (0) target = $region25
    $region24: #{tpu_custom_call.1} parent=1 // pred_region
      _
    $region25: #{tpu_custom_call.1} parent=1 // pred_fallthru
      _
    // Predicated region
    $region26: #{tpu_custom_call.1} parent=1 // pred_check
      _
    $region27: #{tpu_custom_call.1} parent=1 // pred_check_branch
      %59 = sbr.rel (0) target = $region29
    $region28: #{tpu_custom_call.1} parent=1 // pred_region
      _
    $region29: #{tpu_custom_call.1} parent=1 // pred_fallthru
      _
    // Predicated region
    $region30: #{tpu_custom_call.1} parent=1 // pred_check
      _
    $region31: #{tpu_custom_call.1} parent=1 // pred_check_branch
      %61 = sbr.rel (0) target = $region33
    $region32: #{tpu_custom_call.1} parent=1 // pred_region
      _
    $region33: #{tpu_custom_call.1} parent=1 // pred_fallthru
      _
    // Predicated region
    $region34: #{tpu_custom_call.1} parent=1 // pred_check
      _
    $region35: #{tpu_custom_call.1} parent=1 // pred_check_branch
      %63 = sbr.rel (0) target = $region37
    $region36: #{tpu_custom_call.1} parent=1 // pred_region
      _
    $region37: #{tpu_custom_call.1} parent=1 // pred_fallthru
      _
    // Predicated region
    $region38: #{tpu_custom_call.1} parent=1 // pred_check
      _
    $region39: #{tpu_custom_call.1} parent=1 // pred_check_branch
      %65 = sbr.rel (0) target = $region41
    $region40: #{tpu_custom_call.1} parent=1 // pred_region
      %66 = dma.done [#allocation3], 256
    $region41: #{tpu_custom_call.1} parent=1 // pred_fallthru
      _
    // Predicated region
    $region42: #{tpu_custom_call.1} parent=1 // pred_check
      _
    $region43: #{tpu_custom_call.1} parent=1 // pred_check_branch
      %68 = sbr.rel (0) target = $region45
    $region44: #{tpu_custom_call.1} parent=1 // pred_region
      %69 = dma.done [#allocation5], 640
    $region45: #{tpu_custom_call.1} parent=1 // pred_fallthru
      _
    // Predicated region
    $region46: #{tpu_custom_call.1} parent=1 // pred_check
      _
    $region47: #{tpu_custom_call.1} parent=1 // pred_check_branch
      %71 = sbr.rel (0) target = $region49
    $region48: #{tpu_custom_call.1} parent=1 // pred_region
      %72 = dma.done [#allocation5], 640
    $region49: #{tpu_custom_call.1} parent=1 // pred_fallthru
      _
    %v73 = vld [vmem:[%s0] sm:$0xff]
    %v74 = vld [vmem:[%s0 + $0x8] sm:$0xff]
    %v75 = vld [vmem:[#allocation2] sm:$0xff]
    %v76 = vld [vmem:[#allocation2 + $0x8] sm:$0xff]
    %v77 = vld [vmem:[#allocation4] sm:$0xff]
    %v78 = vld [vmem:[#allocation4 + $0x8] sm:$0xff]
    %v79 = vld [vmem:[#allocation4 + $0x10] sm:$0xff]
    %v80 = vld [vmem:[#allocation4 + $0x18] sm:$0xff]
    %v81 = vld [vmem:[#allocation4 + $0x20] sm:$0xf]
    %v82 = vld [vmem:[#allocation6] sm:$0xff]
    %v83 = vld [vmem:[#allocation6 + $0x8] sm:$0xff]
    %v84 = vld [vmem:[#allocation6 + $0x10] sm:$0xff]
    %v85 = vld [vmem:[#allocation6 + $0x18] sm:$0xff]
    %v86 = vld [vmem:[#allocation6 + $0x20] sm:$0xf]
    %vm87 = vcmask 293888
    %v89 = vsel %vm87, %v75, 0
    %v92 = vsel %vm87, %v76, 0
    %vm94 = vcmask 1043456
    %v96 = vsel %vm94, %v86, 0
    %98 = vmatprep.subr.mxu0 0.0
    %99 = vmatpush1.msra.mxu0 %v82
    %100 = vmatprep.subr.mxu0 0.0
    %101 = vmatpush1.msra.mxu0 %v83
    %102 = vmatprep.subr.mxu0 0.0
    %103 = vmatpush1.msra.mxu0 %v84
    %104 = vmatprep.subr.mxu0 0.0
    %105 = vmatpush1.msra.mxu0 %v85
    %106 = vmatprep.subr.mxu0 0.0
    %107 = vmatpush1.msra.mxu0 %v96
    %108 = vmatprep.subr.mxu0 0.0
    %109 = vmatpush1.msra.mxu0 0.0
    %110 = vmatprep.subr.mxu0 0.0
    %111 = vmatpush1.msra.mxu0 0.0
    %112 = vmatprep.subr.mxu0 0.0
    %113 = vmatpush1.msra.mxu0 0.0
    %114 = vmatprep.subr.mxu0 0.0
    %115 = vmatpush1.msra.mxu0 0.0
    %116 = vmatprep.subr.mxu0 0.0
    %117 = vmatpush1.msra.mxu0 0.0
    %118 = vmatprep.subr.mxu0 0.0
    %119 = vmatpush1.msra.mxu0 0.0
    %120 = vmatprep.subr.mxu0 0.0
    %121 = vmatpush1.msra.mxu0 0.0
    %122 = vmatprep.subr.mxu0 0.0
    %123 = vmatpush1.msra.mxu0 0.0
    %124 = vmatprep.subr.mxu0 0.0
    %125 = vmatpush1.msra.mxu0 0.0
    %126 = vmatprep.subr.mxu0 0.0
    %127 = vmatpush1.msra.mxu0 0.0
    %128 = vmatprep.subr.mxu0 0.0
    %129 = vmatpush1.msra.mxu0 0.0
    %130 = vmatprep.subr.mxu0 0.0
    %131 = vmatpush1.msra.mxu0 0.0
    %132 = vmatprep.subr.mxu0 0.0
    %133 = vmatpush1.msra.mxu0 0.0
    %134 = vmatprep.subr.mxu0 0.0
    %135 = vmatpush1.msra.mxu0 0.0
    %136 = vmatprep.subr.mxu0 0.0
    %137 = vmatpush1.msra.mxu0 0.0
    %138 = vmatprep.subr.mxu0 0.0
    %139 = vmatpush1.msra.mxu0 0.0
    %140 = vmatprep.subr.mxu0 0.0
    %141 = vmatpush1.msra.mxu0 0.0
    %142 = vmatprep.subr.mxu0 0.0
    %143 = vmatpush1.msra.mxu0 0.0
    %144 = vmatprep.subr.mxu0 0.0
    %145 = vmatpush1.msra.mxu0 0.0
    %146 = vmatprep.subr.mxu0 0.0
    %147 = vmatpush1.msra.mxu0 0.0
    %148 = vmatprep.subr.mxu0 0.0
    %149 = vmatpush1.msra.mxu0 0.0
    %150 = vmatprep.subr.mxu0 0.0
    %151 = vmatpush1.msra.mxu0 0.0
    %152 = vmatprep.subr.mxu0 0.0
    %153 = vmatpush1.msra.mxu0 0.0
    %154 = vmatprep.subr.mxu0 0.0
    %155 = vmatpush1.msra.mxu0 0.0
    %156 = vmatprep.subr.mxu0 0.0
    %157 = vmatpush1.msra.mxu0 0.0
    %158 = vmatprep.subr.mxu0 0.0
    %159 = vmatpush1.msra.mxu0 0.0
    %160 = vmatprep.subr.mxu0 0.0
    %161 = vmatpush1.msra.mxu0 0.0
    %162 = vmatprep.mubr.f32.mxu0 0.0
    %163 = vmatmul.mubr.f32.gmra.mrb[0].mxu0 %v89
    %v164 = vpop.f32.mrb[0].mxu0
    %v165 = vadd.f32 0.0, %v164
    %v166 = vpop.f32.mrb[0].mxu0
    %167 = vmatprep.mubr.f32.mxu0 0.0
    %168 = vmatmul.mubr.f32.gmra.mrb[0].mxu0 %v92
    %v169 = vpop.f32.mrb[0].mxu0
    %v170 = vadd.f32 0.0, %v169
    %v171 = vpop.f32.mrb[0].mxu0
    %172 = vdwg.mxu0
    %v174 = vsel %vm87, %v73, 0
    %v177 = vsel %vm87, %v74, 0
    %v180 = vsel %vm94, %v81, 0
    %182 = vmatprep.subr.mxu0 0.0
    %183 = vmatpush1.msra.mxu0 %v77
    %184 = vmatprep.subr.mxu0 0.0
    %185 = vmatpush1.msra.mxu0 %v78
    %186 = vmatprep.subr.mxu0 0.0
    %187 = vmatpush1.msra.mxu0 %v79
    %188 = vmatprep.subr.mxu0 0.0
    %189 = vmatpush1.msra.mxu0 %v80
    %190 = vmatprep.subr.mxu0 0.0
    %191 = vmatpush1.msra.mxu0 %v180
    %192 = vmatprep.subr.mxu0 0.0
    %193 = vmatpush1.msra.mxu0 0.0
    %194 = vmatprep.subr.mxu0 0.0
    %195 = vmatpush1.msra.mxu0 0.0
    %196 = vmatprep.subr.mxu0 0.0
    %197 = vmatpush1.msra.mxu0 0.0
    %198 = vmatprep.subr.mxu0 0.0
    %199 = vmatpush1.msra.mxu0 0.0
    %200 = vmatprep.subr.mxu0 0.0
    %201 = vmatpush1.msra.mxu0 0.0
    %202 = vmatprep.subr.mxu0 0.0
    %203 = vmatpush1.msra.mxu0 0.0
    %204 = vmatprep.subr.mxu0 0.0
    %205 = vmatpush1.msra.mxu0 0.0
    %206 = vmatprep.subr.mxu0 0.0
    %207 = vmatpush1.msra.mxu0 0.0
    %208 = vmatprep.subr.mxu0 0.0
    %209 = vmatpush1.msra.mxu0 0.0
    %210 = vmatprep.subr.mxu0 0.0
    %211 = vmatpush1.msra.mxu0 0.0
    %212 = vmatprep.subr.mxu0 0.0
    %213 = vmatpush1.msra.mxu0 0.0
    %214 = vmatprep.subr.mxu0 0.0
    %215 = vmatpush1.msra.mxu0 0.0
    %216 = vmatprep.subr.mxu0 0.0
    %217 = vmatpush1.msra.mxu0 0.0
    %218 = vmatprep.subr.mxu0 0.0
    %219 = vmatpush1.msra.mxu0 0.0
    %220 = vmatprep.subr.mxu0 0.0
    %221 = vmatpush1.msra.mxu0 0.0
    %222 = vmatprep.subr.mxu0 0.0
    %223 = vmatpush1.msra.mxu0 0.0
    %224 = vmatprep.subr.mxu0 0.0
    %225 = vmatpush1.msra.mxu0 0.0
    %226 = vmatprep.subr.mxu0 0.0
    %227 = vmatpush1.msra.mxu0 0.0
    %228 = vmatprep.subr.mxu0 0.0
    %229 = vmatpush1.msra.mxu0 0.0
    %230 = vmatprep.subr.mxu0 0.0
    %231 = vmatpush1.msra.mxu0 0.0
    %232 = vmatprep.subr.mxu0 0.0
    %233 = vmatpush1.msra.mxu0 0.0
    %234 = vmatprep.subr.mxu0 0.0
    %235 = vmatpush1.msra.mxu0 0.0
    %236 = vmatprep.subr.mxu0 0.0
    %237 = vmatpush1.msra.mxu0 0.0
    %238 = vmatprep.subr.mxu0 0.0
    %239 = vmatpush1.msra.mxu0 0.0
    %240 = vmatprep.subr.mxu0 0.0
    %241 = vmatpush1.msra.mxu0 0.0
    %242 = vmatprep.subr.mxu0 0.0
    %243 = vmatpush1.msra.mxu0 0.0
    %244 = vmatprep.subr.mxu0 0.0
    %245 = vmatpush1.msra.mxu0 0.0
    %246 = vmatprep.mubr.f32.mxu0 0.0
    %247 = vmatmul.mubr.f32.gmra.mrb[0].mxu0 %v174
    %v248 = vpop.f32.mrb[0].mxu0
    %v249 = vadd.f32 %v165, %v248
    %v250 = vpop.f32.mrb[0].mxu0
    %251 = vmatprep.mubr.f32.mxu0 0.0
    %252 = vmatmul.mubr.f32.gmra.mrb[0].mxu0 %v177
    %v253 = vpop.f32.mrb[0].mxu0
    %v254 = vadd.f32 %v170, %v253
    %v255 = vpop.f32.mrb[0].mxu0
    %256 = vdwg.mxu0
    %v257 = vld [vmem:[%s4] sm:$0x1]
    %v259 = vlaneseq
    %v260 = vshrl.u32 %v259, 7
    %v261 = vsub.s32 0, %v260
    %v262 = vrot.slane %v257, %v261
    %v264 = vadd.f32 %v249, %v262
    %v265 = vadd.f32 %v254, %v262
    %v266 = vmax.f32 %v264, 0.0
    %v267 = vmax.f32 %v265, 0.0
    %v268 = vld [vmem:[%s5] sm:$0xff]
    %v269 = vld [vmem:[%s5 + $0x8] sm:$0xff]
    %v270 = vld [vmem:[%s5 + $0x10] sm:$0xff]
    %v271 = vld [vmem:[%s5 + $0x18] sm:$0xff]
    %v272 = vld [vmem:[%s5 + $0x20] sm:$0xff]
    %v273 = vld [vmem:[%s5 + $0x28] sm:$0xff]
    %v274 = vld [vmem:[%s5 + $0x30] sm:$0xff]
    %v275 = vld [vmem:[%s5 + $0x38] sm:$0xff]
    %v276 = vld [vmem:[%s5 + $0x40] sm:$0xff]
    %v277 = vld [vmem:[%s5 + $0x48] sm:$0xff]
    %v278 = vld [vmem:[%s5 + $0x50] sm:$0xff]
    %v279 = vld [vmem:[%s5 + $0x58] sm:$0xff]
    %v280 = vld [vmem:[%s6] sm:$0x1]
    %v282 = vlaneseq
    %v283 = vshrl.u32 %v282, 7
    %v284 = vsub.s32 0, %v283
    %v285 = vrot.slane %v280, %v284
    %vm287 = vcmask 785408
    %v289 = vsel %vm287, %v266, 0
    %v292 = vsel %vm287, %v267, 0
    %294 = vmatprep.subr.mxu0 0.0
    %295 = vmatpush1.msra.mxu0 %v268
    %296 = vmatprep.subr.mxu0 0.0
    %297 = vmatpush1.msra.mxu0 %v269
    %298 = vmatprep.subr.mxu0 0.0
    %299 = vmatpush1.msra.mxu0 %v270
    %300 = vmatprep.subr.mxu0 0.0
    %301 = vmatpush1.msra.mxu0 %v271
    %302 = vmatprep.subr.mxu0 0.0
    %303 = vmatpush1.msra.mxu0 %v272
    %304 = vmatprep.subr.mxu0 0.0
    %305 = vmatpush1.msra.mxu0 %v273
    %306 = vmatprep.subr.mxu0 0.0
    %307 = vmatpush1.msra.mxu0 %v274
    %308 = vmatprep.subr.mxu0 0.0
    %309 = vmatpush1.msra.mxu0 %v275
    %310 = vmatprep.subr.mxu0 0.0
    %311 = vmatpush1.msra.mxu0 %v276
    %312 = vmatprep.subr.mxu0 0.0
    %313 = vmatpush1.msra.mxu0 %v277
    %314 = vmatprep.subr.mxu0 0.0
    %315 = vmatpush1.msra.mxu0 %v278
    %316 = vmatprep.subr.mxu0 0.0
    %317 = vmatpush1.msra.mxu0 %v279
    %318 = vmatprep.subr.mxu0 0.0
    %319 = vmatpush1.msra.mxu0 0.0
    %320 = vmatprep.subr.mxu0 0.0
    %321 = vmatpush1.msra.mxu0 0.0
    %322 = vmatprep.subr.mxu0 0.0
    %323 = vmatpush1.msra.mxu0 0.0
    %324 = vmatprep.subr.mxu0 0.0
    %325 = vmatpush1.msra.mxu0 0.0
    %326 = vmatprep.subr.mxu0 0.0
    %327 = vmatpush1.msra.mxu0 0.0
    %328 = vmatprep.subr.mxu0 0.0
    %329 = vmatpush1.msra.mxu0 0.0
    %330 = vmatprep.subr.mxu0 0.0
    %331 = vmatpush1.msra.mxu0 0.0
    %332 = vmatprep.subr.mxu0 0.0
    %333 = vmatpush1.msra.mxu0 0.0
    %334 = vmatprep.subr.mxu0 0.0
    %335 = vmatpush1.msra.mxu0 0.0
    %336 = vmatprep.subr.mxu0 0.0
    %337 = vmatpush1.msra.mxu0 0.0
    %338 = vmatprep.subr.mxu0 0.0
    %339 = vmatpush1.msra.mxu0 0.0
    %340 = vmatprep.subr.mxu0 0.0
    %341 = vmatpush1.msra.mxu0 0.0
    %342 = vmatprep.subr.mxu0 0.0
    %343 = vmatpush1.msra.mxu0 0.0
    %344 = vmatprep.subr.mxu0 0.0
    %345 = vmatpush1.msra.mxu0 0.0
    %346 = vmatprep.subr.mxu0 0.0
    %347 = vmatpush1.msra.mxu0 0.0
    %348 = vmatprep.subr.mxu0 0.0
    %349 = vmatpush1.msra.mxu0 0.0
    %350 = vmatprep.subr.mxu0 0.0
    %351 = vmatpush1.msra.mxu0 0.0
    %352 = vmatprep.subr.mxu0 0.0
    %353 = vmatpush1.msra.mxu0 0.0
    %354 = vmatprep.subr.mxu0 0.0
    %355 = vmatpush1.msra.mxu0 0.0
    %356 = vmatprep.subr.mxu0 0.0
    %357 = vmatpush1.msra.mxu0 0.0
    %358 = vmatprep.mubr.f32.mxu0 0.0
    %359 = vmatmul.mubr.f32.gmra.mrb[0].mxu0 %v289
    %v360 = vpop.f32.mrb[0].mxu0
    %v361 = vadd.f32 %v285, %v360
    %v362 = vpop.f32.mrb[0].mxu0
    %363 = vmatprep.mubr.f32.mxu0 0.0
    %364 = vmatmul.mubr.f32.gmra.mrb[0].mxu0 %v292
    %v365 = vpop.f32.mrb[0].mxu0
    %v366 = vadd.f32 %v285, %v365
    %v367 = vpop.f32.mrb[0].mxu0
    %368 = vdwg.mxu0
    %v369 = vmax.f32 %v361, 0.0
    %v370 = vmax.f32 %v366, 0.0
    %v371 = vld [vmem:[%s7] sm:$0xff]
    %v372 = vld [vmem:[%s7 + $0x8] sm:$0xff]
    %v373 = vld [vmem:[%s7 + $0x10] sm:$0xff]
    %v374 = vld [vmem:[%s7 + $0x18] sm:$0xff]
    %v375 = vld [vmem:[%s7 + $0x20] sm:$0xff]
    %v376 = vld [vmem:[%s7 + $0x28] sm:$0xff]
    %v377 = vld [vmem:[%s7 + $0x30] sm:$0xff]
    %v378 = vld [vmem:[%s7 + $0x38] sm:$0xff]
    %v379 = vld [vmem:[%s7 + $0x40] sm:$0xff]
    %v380 = vld [vmem:[%s7 + $0x48] sm:$0xff]
    %v381 = vld [vmem:[%s7 + $0x50] sm:$0xff]
    %v382 = vld [vmem:[%s7 + $0x58] sm:$0xff]
    %v383 = vld [vmem:[%s8] sm:$0x1]
    %v385 = vlaneseq
    %v386 = vshrl.u32 %v385, 7
    %v387 = vsub.s32 0, %v386
    %v388 = vrot.slane %v383, %v387
    %v391 = vsel %vm287, %v369, 0
    %v394 = vsel %vm287, %v370, 0
    %396 = vmatprep.subr.mxu0 0.0
    %397 = vmatpush1.msra.mxu0 %v371
    %398 = vmatprep.subr.mxu0 0.0
    %399 = vmatpush1.msra.mxu0 %v372
    %400 = vmatprep.subr.mxu0 0.0
    %401 = vmatpush1.msra.mxu0 %v373
    %402 = vmatprep.subr.mxu0 0.0
    %403 = vmatpush1.msra.mxu0 %v374
    %404 = vmatprep.subr.mxu0 0.0
    %405 = vmatpush1.msra.mxu0 %v375
    %406 = vmatprep.subr.mxu0 0.0
    %407 = vmatpush1.msra.mxu0 %v376
    %408 = vmatprep.subr.mxu0 0.0
    %409 = vmatpush1.msra.mxu0 %v377
    %410 = vmatprep.subr.mxu0 0.0
    %411 = vmatpush1.msra.mxu0 %v378
    %412 = vmatprep.subr.mxu0 0.0
    %413 = vmatpush1.msra.mxu0 %v379
    %414 = vmatprep.subr.mxu0 0.0
    %415 = vmatpush1.msra.mxu0 %v380
    %416 = vmatprep.subr.mxu0 0.0
    %417 = vmatpush1.msra.mxu0 %v381
    %418 = vmatprep.subr.mxu0 0.0
    %419 = vmatpush1.msra.mxu0 %v382
    %420 = vmatprep.subr.mxu0 0.0
    %421 = vmatpush1.msra.mxu0 0.0
    %422 = vmatprep.subr.mxu0 0.0
    %423 = vmatpush1.msra.mxu0 0.0
    %424 = vmatprep.subr.mxu0 0.0
    %425 = vmatpush1.msra.mxu0 0.0
    %426 = vmatprep.subr.mxu0 0.0
    %427 = vmatpush1.msra.mxu0 0.0
    %428 = vmatprep.subr.mxu0 0.0
    %429 = vmatpush1.msra.mxu0 0.0
    %430 = vmatprep.subr.mxu0 0.0
    %431 = vmatpush1.msra.mxu0 0.0
    %432 = vmatprep.subr.mxu0 0.0
    %433 = vmatpush1.msra.mxu0 0.0
    %434 = vmatprep.subr.mxu0 0.0
    %435 = vmatpush1.msra.mxu0 0.0
    %436 = vmatprep.subr.mxu0 0.0
    %437 = vmatpush1.msra.mxu0 0.0
    %438 = vmatprep.subr.mxu0 0.0
    %439 = vmatpush1.msra.mxu0 0.0
    %440 = vmatprep.subr.mxu0 0.0
    %441 = vmatpush1.msra.mxu0 0.0
    %442 = vmatprep.subr.mxu0 0.0
    %443 = vmatpush1.msra.mxu0 0.0
    %444 = vmatprep.subr.mxu0 0.0
    %445 = vmatpush1.msra.mxu0 0.0
    %446 = vmatprep.subr.mxu0 0.0
    %447 = vmatpush1.msra.mxu0 0.0
    %448 = vmatprep.subr.mxu0 0.0
    %449 = vmatpush1.msra.mxu0 0.0
    %450 = vmatprep.subr.mxu0 0.0
    %451 = vmatpush1.msra.mxu0 0.0
    %452 = vmatprep.subr.mxu0 0.0
    %453 = vmatpush1.msra.mxu0 0.0
    %454 = vmatprep.subr.mxu0 0.0
    %455 = vmatpush1.msra.mxu0 0.0
    %456 = vmatprep.subr.mxu0 0.0
    %457 = vmatpush1.msra.mxu0 0.0
    %458 = vmatprep.subr.mxu0 0.0
    %459 = vmatpush1.msra.mxu0 0.0
    %460 = vmatprep.mubr.f32.mxu0 0.0
    %461 = vmatmul.mubr.f32.gmra.mrb[0].mxu0 %v391
    %v462 = vpop.f32.mrb[0].mxu0
    %v463 = vadd.f32 %v388, %v462
    %v464 = vpop.f32.mrb[0].mxu0
    %465 = vmatprep.mubr.f32.mxu0 0.0
    %466 = vmatmul.mubr.f32.gmra.mrb[0].mxu0 %v394
    %v467 = vpop.f32.mrb[0].mxu0
    %v468 = vadd.f32 %v388, %v467
    %v469 = vpop.f32.mrb[0].mxu0
    %470 = vdwg.mxu0
    %vm471 = vcmask 23552
    %472 = vst.msk [vmem:[%s9] sm:$0xff] %vm471, %v463
    %473 = vst.msk [vmem:[%s9 + $0x8] sm:$0xff] %vm471, %v468
    // Predicated region
    $region50: #{tpu_custom_call.1} parent=1 // pred_check
      _
    $region51: #{tpu_custom_call.1} parent=1 // pred_check_branch
      %475 = sbr.rel (0) target = $region53
    $region52: #{tpu_custom_call.1} parent=1 // pred_region
      _
    $region53: #{tpu_custom_call.1} parent=1 // pred_fallthru
      _
    // Predicated region
    $region54: #{tpu_custom_call.1} parent=1 // pred_check
      _
    $region55: #{tpu_custom_call.1} parent=1 // pred_check_branch
      %477 = sbr.rel (0) target = $region57
    $region56: #{tpu_custom_call.1} parent=1 // pred_region
      _
    $region57: #{tpu_custom_call.1} parent=1 // pred_fallthru
      _
    %478 = vsyncpa [#allocation3], 1
    %479 = vsyncpa [#allocation5], 1

</llo_original>
